<compile_context>
chip_gen: v6e
topology: v6e:2x2x1
jax: 0.10.0
libtpu: 0.0.40
codegen_flags: <defaults>
</compile_context>

<pallas_src>
import jax
import jax.numpy as jnp
from jax.experimental import pallas as pl
from jax.experimental.pallas import tpu as pltpu


# ---------------------------------------------------------------------------
# Kernel body
# ---------------------------------------------------------------------------
def _add_kernel(x1_ref, x2_ref, o_ref):
    # Pure VPU elementwise add on the whole VMEM tile. The kernel is entirely
    # HBM/DMA bound, so any neighboring elementwise work (bias, scale,
    # activation) fused into this body would be free — that is the extension
    # point if this layer is embedded in a larger graph.
    o_ref[...] = x1_ref[...] + x2_ref[...]


# ---------------------------------------------------------------------------
# Helpers
# ---------------------------------------------------------------------------
_SMALL_BYPASS_BYTES = 256 * 1024  # below this, fused XLA add wins


def _round_up(x, m):
    return ((x + m - 1) // m) * m


def _cdiv(a, b):
    return -(-a // b)


def _sublane_multiple(dtype):
    # f32 -> 8, bf16/f16 -> 16, int8/fp8 -> 32 (sub-32-bit packs along sublanes)
    itemsize = jnp.dtype(dtype).itemsize
    return max(8, 32 // max(1, itemsize))


def _tpu_generation():
    """Best-effort probe: (num_tensorcores, usable VMEM budget in bytes)."""
    kind = ""
    try:
        kind = jax.devices()[0].device_kind.lower()
    except Exception:
        pass
    if "v7" in kind or "tpu7" in kind:
        # v7x: 2 TensorCores/chip, 64 MiB VMEM/TC -> leave headroom for Mosaic.
        return 2, 52 * 1024 * 1024
    # v5e / v6e: 1 TensorCore, 128 MiB VMEM.
    return 1, 100 * 1024 * 1024


def _bitcast_2d_view(shape, dtype):
    """Return (rows, cols) such that reshaping to it keeps the minor (lane)
    dimension and the physical (8*pack, 128) tiling untouched, i.e. the
    reshape lowers to a bitcast (no HBM relayout copy). None otherwise."""
    if len(shape) == 0:
        return None
    if len(shape) == 1:
        return (1, shape[0]) if shape[0] % 128 == 0 else None
    cols = shape[-1]
    if cols % 128 != 0:
        return None
    if len(shape) == 2:
        return (shape[0], cols)
    # Collapsing leading dims is layout-preserving only if each trailing
    # (d[-2], d[-1]) slab carries no sublane padding.
    if shape[-2] % _sublane_multiple(dtype) == 0:
        rows = 1
        for d in shape[:-1]:
            rows *= d
        return (rows, cols)
    return None


def _choose_row_tile(rows, row_bytes, sub, n_tc, target_bytes):
    """Pick a row-tile size (multiple of `sub` or full extent) and grid length.

    On 2-TC chips the grid is kept even and balanced so both TensorCores get
    an equal share of the (HBM-bound) work; on 1-TC chips mid-sized inputs run
    as a single block to avoid extra pipeline prologue/epilogue steps."""
    target_rows = max(sub, (target_bytes // row_bytes) // sub * sub)
    if rows <= target_rows:
        if n_tc >= 2 and rows > 2 * sub:
            tr = _round_up(_cdiv(rows, 2), sub)      # exactly 2 balanced blocks
        else:
            tr = rows                                # single full-extent block
    else:
        nblocks = _cdiv(rows, target_rows)
        if n_tc >= 2:
            nblocks = _round_up(nblocks, 2)          # even split across 2 TCs
        tr = _round_up(_cdiv(rows, nblocks), sub)
    return tr, _cdiv(rows, tr)


def _make_in_spec(block_shape, index_map, buffers):
    if buffers > 2:
        try:
            # Deeper input buffering hides DMA-issue latency at step
            # boundaries; compute per step is ~zero so the pipe is all DMA.
            return pl.BlockSpec(block_shape, index_map,
                                pipeline_mode=pl.Buffered(buffers))
        except Exception:
            pass  # older JAX without pipeline_mode: plain double buffering
    return pl.BlockSpec(block_shape, index_map)


def _add_nd_fallback(x1, x2, target_bytes, vmem_budget):
    """Pallas add on the original N-D layout (no reshape at all): tile only
    the leading dim, keep the full trailing extents (always a legal block).
    Used when a lane-aligned 2-D bitcast view does not exist but the Pallas
    path is explicitly requested."""
    shape = x1.shape
    ndim = len(shape)
    itemsize = jnp.dtype(x1.dtype).itemsize
    d0 = shape[0]
    slice_bytes = (x1.size // d0) * itemsize

    if 6 * slice_bytes > vmem_budget:
        return x1 + x2  # even one leading-dim slice won't double-buffer

    if ndim >= 3:
        b0 = max(1, min(d0, target_bytes // max(1, slice_bytes)))
    else:
        # ndim <= 2: keep the block full-extent (a partial leading block of a
        # 2-D array would need 8-alignment on the sublane axis).
        b0 = d0
        if 6 * d0 * slice_bytes > vmem_budget:
            return x1 + x2

    block = (b0,) + tuple(shape[1:])
    grid = (_cdiv(d0, b0),)
    imap = lambda i: (i,) + (0,) * (ndim - 1)
    tile_bytes = b0 * slice_bytes
    vmem_limit = int(min(vmem_budget, max(32 << 20, 6 * tile_bytes + (2 << 20))))

    return pl.pallas_call(
        _add_kernel,
        out_shape=jax.ShapeDtypeStruct(shape, x1.dtype),
        grid_spec=pltpu.PrefetchScalarGridSpec(
            num_scalar_prefetch=0,
            grid=grid,
            in_specs=[pl.BlockSpec(block, imap), pl.BlockSpec(block, imap)],
            out_specs=pl.BlockSpec(block, imap),
        ),
        compiler_params=pltpu.CompilerParams(
            dimension_semantics=("parallel",),
            vmem_limit_bytes=vmem_limit,
        ),
    )(x1, x2)


# ---------------------------------------------------------------------------
# Public wrapper (the _addLayer forward)
# ---------------------------------------------------------------------------
def add_layer(x1, x2, *, force_pallas=False, donate_x1=False):
    """Elementwise add (the _addLayer forward) as a Pallas TPU kernel.

    Falls back to XLA's fused add whenever the kernel cannot beat it (tiny
    inputs, broadcasting, or layouts with no lane-preserving 2-D view)."""
    # The torch module relies on `+` broadcasting / promotion; anything other
    # than the same-shape / same-dtype fast path goes straight to XLA.
    if x1.shape != x2.shape or x1.dtype != x2.dtype or x1.ndim == 0:
        return x1 + x2

    shape = x1.shape
    dtype = x1.dtype
    itemsize = jnp.dtype(dtype).itemsize
    total_bytes = x1.size * itemsize

    # Tiny inputs: launch + pipeline prologue dominates; bypass.
    if not force_pallas and total_bytes < _SMALL_BYPASS_BYTES:
        return x1 + x2

    n_tc, vmem_budget = _tpu_generation()
    is_v7 = n_tc >= 2
    target_bytes = (8 << 20) if is_v7 else (4 << 20)   # per-operand tile size
    input_buffers = 2 if is_v7 else 3                  # no Buffered(3) w/ 8 MiB

    view = _bitcast_2d_view(shape, dtype)
    if view is None:
        # No bitcast-safe lane-dense view: a relayout copy would double HBM
        # traffic of a bandwidth-bound op, so let XLA fuse the add instead.
        if not force_pallas:
            return x1 + x2
        return _add_nd_fallback(x1, x2, target_bytes, vmem_budget)

    rows, cols = view
    sub = _sublane_multiple(dtype)
    row_bytes = cols * itemsize
    tr, grid_len = _choose_row_tile(rows, row_bytes, sub, n_tc, target_bytes)

    tile_bytes = tr * row_bytes
    n_tiles = 2 * input_buffers + 2        # buffered inputs + 2 output buffers
    needed = n_tiles * tile_bytes
    if needed > vmem_budget:
        # Pathologically wide rows: cannot tile along the sublane axis.
        return x1 + x2
    vmem_limit = int(min(vmem_budget, max(32 << 20, needed + (2 << 20))))

    # Both reshapes only collapse leading dims (lane dim unchanged) -> bitcast.
    x1_2d = x1.reshape(rows, cols)
    x2_2d = x2.reshape(rows, cols)

    def call(buffers):
        in_spec = _make_in_spec((tr, cols), lambda i: (i, 0), buffers)
        kwargs = {}
        if donate_x1:
            kwargs["input_output_aliases"] = {0: 0}
        return pl.pallas_call(
            _add_kernel,
            out_shape=jax.ShapeDtypeStruct((rows, cols), dtype),
            grid_spec=pltpu.PrefetchScalarGridSpec(
                num_scalar_prefetch=0,
                grid=(grid_len,),
                in_specs=[in_spec, in_spec],
                out_specs=pl.BlockSpec((tr, cols), lambda i: (i, 0)),
            ),
            compiler_params=pltpu.CompilerParams(
                dimension_semantics=("parallel",),
                vmem_limit_bytes=vmem_limit,
            ),
            cost_estimate=pl.CostEstimate(
                flops=x1.size,
                transcendentals=0,
                bytes_accessed=3 * total_bytes,
            ),
            **kwargs,
        )(x1_2d, x2_2d)

    if input_buffers > 2:
        try:
            out_2d = call(input_buffers)
        except Exception:
            # Triple-buffered input pipelining unsupported: plain double buffer.
            out_2d = call(2)
    else:
        out_2d = call(input_buffers)

    return out_2d.reshape(shape)           # bitcast back to the original shape


# ---------------------------------------------------------------------------
# Demo / self-test
# ---------------------------------------------------------------------------
if __name__ == "__main__":
    key = jax.random.PRNGKey(0)
    k1, k2, k3, k4, k5, k6 = jax.random.split(key, 6)

    # (a) Small NCHW shape consistent with the module (batch=2, channels=4,
    #     16x16): the default path takes the XLA bypass.
    x1 = jax.random.normal(k1, (2, 4, 16, 16), dtype=jnp.float32)
    x2 = jax.random.normal(k2, (2, 4, 16, 16), dtype=jnp.float32)
    out_small = jax.block_until_ready(add_layer(x1, x2))
    assert out_small.shape == x1.shape
    assert jnp.allclose(out_small, x1 + x2, atol=1e-6, rtol=1e-6)

    # (b) Force the Pallas kernel on the small module shape (N-D fallback path,
    #     full-extent block, no reshape/relayout).
    out_small_pallas = jax.block_until_ready(add_layer(x1, x2, force_pallas=True))
    assert jnp.allclose(out_small_pallas, x1 + x2, atol=1e-6, rtol=1e-6)

    # (c) Larger 128-lane-aligned input exercising the tiled 2-D bitcast-view
    #     path (multi-block grid, ~4 MiB tiles, ragged-safe cdiv grid).
    y1 = jax.random.normal(k3, (32, 8, 64, 128), dtype=jnp.float32)   # 8 MiB
    y2 = jax.random.normal(k4, (32, 8, 64, 128), dtype=jnp.float32)
    out_big = jax.block_until_ready(add_layer(y1, y2))
    assert out_big.shape == y1.shape
    assert jnp.allclose(out_big, y1 + y2, atol=1e-6, rtol=1e-6)

    # (d) bf16 input (sublane packing = 16) through the same tiled path.
    z1 = jax.random.normal(k5, (8, 8, 64, 128), dtype=jnp.bfloat16)
    z2 = jax.random.normal(k6, (8, 8, 64, 128), dtype=jnp.bfloat16)
    out_bf16 = jax.block_until_ready(add_layer(z1, z2))
    ref_bf16 = z1 + z2
    assert out_bf16.dtype == jnp.bfloat16
    assert jnp.allclose(out_bf16.astype(jnp.float32),
                        ref_bf16.astype(jnp.float32), atol=1e-2, rtol=1e-2)

    print("KERNEL_OK")
</pallas_src>

<mosaic_0001>
module attributes {stable_mosaic.version = 11 : i64} {
  func.func @_add_kernel(%arg0: i32, %arg1: memref<2x4x16x16xf32, #tpu.memory_space<vmem>>, %arg2: memref<2x4x16x16xf32, #tpu.memory_space<vmem>>, %arg3: memref<2x4x16x16xf32, #tpu.memory_space<vmem>>) attributes {dimension_semantics = [#tpu.dimension_semantics<parallel>], iteration_bounds = array<i64: 1>, scalar_prefetch = 0 : i64, scratch_operands = 0 : i64, tpu.core_type = #tpu.core_type<tc>, window_params = [{transform_indices = @transform_0, window_bounds = array<i64: 2, 4, 16, 16>}, {transform_indices = @transform_1, window_bounds = array<i64: 2, 4, 16, 16>}, {transform_indices = @transform_2, window_bounds = array<i64: 2, 4, 16, 16>}]} {
    %c0 = arith.constant 0 : index
    %c0_0 = arith.constant 0 : index
    %c0_1 = arith.constant 0 : index
    %c0_2 = arith.constant 0 : index
    %0 = vector.load %arg1[%c0, %c0_0, %c0_1, %c0_2] : memref<2x4x16x16xf32, #tpu.memory_space<vmem>>, vector<2x4x16x16xf32>
    %c0_3 = arith.constant 0 : index
    %c0_4 = arith.constant 0 : index
    %c0_5 = arith.constant 0 : index
    %c0_6 = arith.constant 0 : index
    %1 = vector.load %arg2[%c0_3, %c0_4, %c0_5, %c0_6] : memref<2x4x16x16xf32, #tpu.memory_space<vmem>>, vector<2x4x16x16xf32>
    %2 = arith.addf %0, %1 : vector<2x4x16x16xf32>
    %c0_7 = arith.constant 0 : index
    %c0_8 = arith.constant 0 : index
    %c0_9 = arith.constant 0 : index
    %c0_10 = arith.constant 0 : index
    %3 = vector.load %arg3[%c0_7, %c0_8, %c0_9, %c0_10] : memref<2x4x16x16xf32, #tpu.memory_space<vmem>>, vector<2x4x16x16xf32>
    tpu.vector_store %arg3[%c0_7, %c0_8, %c0_9, %c0_10], %2 {strides = array<i32>} : memref<2x4x16x16xf32, #tpu.memory_space<vmem>>, vector<2x4x16x16xf32>,
    return
  }
  func.func @transform_0(%arg0: i32) -> (i32, i32, i32, i32) {
    %c0_i32 = arith.constant 0 : i32
    %c0_i32_0 = arith.constant 0 : i32
    %c0_i32_1 = arith.constant 0 : i32
    %c0_i32_2 = arith.constant 0 : i32
    return %arg0, %c0_i32, %c0_i32_0, %c0_i32_1 : i32, i32, i32, i32
  }
  func.func @transform_1(%arg0: i32) -> (i32, i32, i32, i32) {
    %c0_i32 = arith.constant 0 : i32
    %c0_i32_0 = arith.constant 0 : i32
    %c0_i32_1 = arith.constant 0 : i32
    %c0_i32_2 = arith.constant 0 : i32
    return %arg0, %c0_i32, %c0_i32_0, %c0_i32_1 : i32, i32, i32, i32
  }
  func.func @transform_2(%arg0: i32) -> (i32, i32, i32, i32) {
    %c0_i32 = arith.constant 0 : i32
    %c0_i32_0 = arith.constant 0 : i32
    %c0_i32_1 = arith.constant 0 : i32
    %c0_i32_2 = arith.constant 0 : i32
    return %arg0, %c0_i32, %c0_i32_0, %c0_i32_1 : i32, i32, i32, i32
  }
}

</mosaic_0001>

<llo_original>
// kernel: tpu_custom_call.1
$region0: #{tpu_custom_call.1}
  #allocation0 [shape = 'u32[]', space=smem, size = 0x4, offset = 0x4, fixed_abs, tag = 'smem constant byte address 0x4 - core index']
  #allocation1 [shape = 'u32[144,128]{1,0:T(1,128)}', space=vmem, size = 0x12000, scoped, tag = 'internal scratch']
  %s0 = inlined_call_operand.hbm [shape: f32[2,4,16,16], index: 0, kind: input, shape index: {}]
  %s1 = inlined_call_operand.hbm [shape: f32[2,4,16,16], index: 1, kind: input, shape index: {}]
  %s2 = inlined_call_operand.hbm [shape: f32[2,4,16,16], index: 2, kind: output, shape index: {}]
  %s3 = sld [smem:[#allocation0]]
  $region26: #{tpu_custom_call.1} parent=0
    _
  %s5 = ssub.s32 1, %s3
  %s6 = scalar_select 0, %s5, %s3
  $region1: #{tpu_custom_call.1} parent=0
    #allocation2 [shape = 'u8[65536]{0}', space=vmem, size = 0x10000, scoped, tag = 'input window, operand 0, single buffered']
    #allocation3 [shape = 's32[1]{0}', space=sflag, size = 0x4, scoped, tag = 'scoped memory for tpu_custom_call.1']
    #allocation4 [shape = 's32[1]{0}', space=sflag, size = 0x4, scoped, tag = 'scoped memory for tpu_custom_call.1']
    #allocation5 [shape = 'u8[65536]{0}', space=vmem, size = 0x10000, scoped, tag = 'input window, operand 1, single buffered']
    #allocation6 [shape = 's32[1]{0}', space=sflag, size = 0x4, scoped, tag = 'scoped memory for tpu_custom_call.1']
    #allocation7 [shape = 'u8[65536]{0}', space=vmem, size = 0x10000, scoped, tag = 'output window, operand 0, single buffered']
    %7 = vsyncpa [#allocation3], 0
    %8 = vsyncpa [#allocation6], 0
    %9 = vsyncpa [#allocation4], 0
    // Predicated region
    $region2: #{tpu_custom_call.1} parent=1 // pred_check
      _
    $region3: #{tpu_custom_call.1} parent=1 // pred_check_branch
      %11 = sbr.rel (0) target = $region5
    $region4: #{tpu_custom_call.1} parent=1 // pred_region
      %s13 = ssub.s32 2048, 2048
      %14 = vsyncadd [#allocation3], %s13
      %s15 = sshll.u32 [#allocation2], 4
      %s16 = int_to_ptr.vmem [resolvable:$true] %s15
      %21 = dma.hbm_to_vmem [thread:$0]  %s0, 2048, %s16, [#allocation3], 128, 128, 8
    $region5: #{tpu_custom_call.1} parent=1 // pred_fallthru
      _
    // Predicated region
    $region6: #{tpu_custom_call.1} parent=1 // pred_check
      _
    $region7: #{tpu_custom_call.1} parent=1 // pred_check_branch
      %23 = sbr.rel (0) target = $region9
    $region8: #{tpu_custom_call.1} parent=1 // pred_region
      %s25 = ssub.s32 2048, 2048
      %26 = vsyncadd [#allocation6], %s25
      %s27 = sshll.u32 [#allocation5], 4
      %s28 = int_to_ptr.vmem [resolvable:$true] %s27
      %33 = dma.hbm_to_vmem [thread:$0]  %s1, 2048, %s28, [#allocation6], 128, 128, 8
    $region9: #{tpu_custom_call.1} parent=1 // pred_fallthru
      _
    // Predicated region
    $region10: #{tpu_custom_call.1} parent=1 // pred_check
      _
    $region11: #{tpu_custom_call.1} parent=1 // pred_check_branch
      %35 = sbr.rel (0) target = $region13
    $region12: #{tpu_custom_call.1} parent=1 // pred_region
      %36 = dma.done [#allocation3], 2048
    $region13: #{tpu_custom_call.1} parent=1 // pred_fallthru
      _
    // Predicated region
    $region14: #{tpu_custom_call.1} parent=1 // pred_check
      _
    $region15: #{tpu_custom_call.1} parent=1 // pred_check_branch
      %38 = sbr.rel (0) target = $region17
    $region16: #{tpu_custom_call.1} parent=1 // pred_region
      %39 = dma.done [#allocation6], 2048
    $region17: #{tpu_custom_call.1} parent=1 // pred_fallthru
      _
    %v40 = vld [vmem:[#allocation2] sm:$0xff]
    %v41 = vld [vmem:[#allocation2 + $0x8] sm:$0xff]
    %v42 = vld [vmem:[#allocation2 + $0x10] sm:$0xff]
    %v43 = vld [vmem:[#allocation2 + $0x18] sm:$0xff]
    %v44 = vld [vmem:[#allocation2 + $0x20] sm:$0xff]
    %v45 = vld [vmem:[#allocation2 + $0x28] sm:$0xff]
    %v46 = vld [vmem:[#allocation2 + $0x30] sm:$0xff]
    %v47 = vld [vmem:[#allocation2 + $0x38] sm:$0xff]
    %v48 = vld [vmem:[#allocation2 + $0x40] sm:$0xff]
    %v49 = vld [vmem:[#allocation2 + $0x48] sm:$0xff]
    %v50 = vld [vmem:[#allocation2 + $0x50] sm:$0xff]
    %v51 = vld [vmem:[#allocation2 + $0x58] sm:$0xff]
    %v52 = vld [vmem:[#allocation2 + $0x60] sm:$0xff]
    %v53 = vld [vmem:[#allocation2 + $0x68] sm:$0xff]
    %v54 = vld [vmem:[#allocation2 + $0x70] sm:$0xff]
    %v55 = vld [vmem:[#allocation2 + $0x78] sm:$0xff]
    %v56 = vld [vmem:[#allocation5] sm:$0xff]
    %v57 = vld [vmem:[#allocation5 + $0x8] sm:$0xff]
    %v58 = vld [vmem:[#allocation5 + $0x10] sm:$0xff]
    %v59 = vld [vmem:[#allocation5 + $0x18] sm:$0xff]
    %v60 = vld [vmem:[#allocation5 + $0x20] sm:$0xff]
    %v61 = vld [vmem:[#allocation5 + $0x28] sm:$0xff]
    %v62 = vld [vmem:[#allocation5 + $0x30] sm:$0xff]
    %v63 = vld [vmem:[#allocation5 + $0x38] sm:$0xff]
    %v64 = vld [vmem:[#allocation5 + $0x40] sm:$0xff]
    %v65 = vld [vmem:[#allocation5 + $0x48] sm:$0xff]
    %v66 = vld [vmem:[#allocation5 + $0x50] sm:$0xff]
    %v67 = vld [vmem:[#allocation5 + $0x58] sm:$0xff]
    %v68 = vld [vmem:[#allocation5 + $0x60] sm:$0xff]
    %v69 = vld [vmem:[#allocation5 + $0x68] sm:$0xff]
    %v70 = vld [vmem:[#allocation5 + $0x70] sm:$0xff]
    %v71 = vld [vmem:[#allocation5 + $0x78] sm:$0xff]
    %v72 = vadd.f32 %v40, %v56
    %v73 = vadd.f32 %v41, %v57
    %v74 = vadd.f32 %v42, %v58
    %v75 = vadd.f32 %v43, %v59
    %v76 = vadd.f32 %v44, %v60
    %v77 = vadd.f32 %v45, %v61
    %v78 = vadd.f32 %v46, %v62
    %v79 = vadd.f32 %v47, %v63
    %v80 = vadd.f32 %v48, %v64
    %v81 = vadd.f32 %v49, %v65
    %v82 = vadd.f32 %v50, %v66
    %v83 = vadd.f32 %v51, %v67
    %v84 = vadd.f32 %v52, %v68
    %v85 = vadd.f32 %v53, %v69
    %v86 = vadd.f32 %v54, %v70
    %v87 = vadd.f32 %v55, %v71
    %vm88 = vcmask 130048
    %89 = vst.msk [vmem:[#allocation7] sm:$0xff] %vm88, %v72
    %90 = vst.msk [vmem:[#allocation7 + $0x8] sm:$0xff] %vm88, %v73
    %91 = vst.msk [vmem:[#allocation7 + $0x10] sm:$0xff] %vm88, %v74
    %92 = vst.msk [vmem:[#allocation7 + $0x18] sm:$0xff] %vm88, %v75
    %93 = vst.msk [vmem:[#allocation7 + $0x20] sm:$0xff] %vm88, %v76
    %94 = vst.msk [vmem:[#allocation7 + $0x28] sm:$0xff] %vm88, %v77
    %95 = vst.msk [vmem:[#allocation7 + $0x30] sm:$0xff] %vm88, %v78
    %96 = vst.msk [vmem:[#allocation7 + $0x38] sm:$0xff] %vm88, %v79
    %97 = vst.msk [vmem:[#allocation7 + $0x40] sm:$0xff] %vm88, %v80
    %98 = vst.msk [vmem:[#allocation7 + $0x48] sm:$0xff] %vm88, %v81
    %99 = vst.msk [vmem:[#allocation7 + $0x50] sm:$0xff] %vm88, %v82
    %100 = vst.msk [vmem:[#allocation7 + $0x58] sm:$0xff] %vm88, %v83
    %101 = vst.msk [vmem:[#allocation7 + $0x60] sm:$0xff] %vm88, %v84
    %102 = vst.msk [vmem:[#allocation7 + $0x68] sm:$0xff] %vm88, %v85
    %103 = vst.msk [vmem:[#allocation7 + $0x70] sm:$0xff] %vm88, %v86
    %104 = vst.msk [vmem:[#allocation7 + $0x78] sm:$0xff] %vm88, %v87
    // Predicated region
    $region18: #{tpu_custom_call.1} parent=1 // pred_check
      _
    $region19: #{tpu_custom_call.1} parent=1 // pred_check_branch
      %106 = sbr.rel (0) target = $region21
    $region20: #{tpu_custom_call.1} parent=1 // pred_region
      %s108 = ssub.s32 2048, 2048
      %109 = vsyncadd [#allocation4], %s108
      %s110 = sshll.u32 [#allocation7], 4
      %s111 = int_to_ptr.vmem [resolvable:$true] %s110
      %116 = dma.vmem_to_hbm [thread:$0]  %s111, 2048, %s2, [#allocation4], 128, 128, 8
    $region21: #{tpu_custom_call.1} parent=1 // pred_fallthru
      _
    // Predicated region
    $region22: #{tpu_custom_call.1} parent=1 // pred_check
      _
    $region23: #{tpu_custom_call.1} parent=1 // pred_check_branch
      %118 = sbr.rel (0) target = $region25
    $region24: #{tpu_custom_call.1} parent=1 // pred_region
      %119 = dma.done [#allocation4], 2048
    $region25: #{tpu_custom_call.1} parent=1 // pred_fallthru
      _
    %120 = vsyncpa [#allocation3], 1
    %121 = vsyncpa [#allocation6], 1
    %122 = vsyncpa [#allocation4], 1

</llo_original>
